<compile_context>
chip_gen: v7x
topology: tpu7x:2x2x1
jax: 0.10.0
libtpu: 0.0.40
codegen_flags: <defaults>
</compile_context>

<pallas_src>
import functools

import jax
import jax.numpy as jnp
from jax.experimental import pallas as pl
from jax.experimental.pallas import tpu as pltpu


_LANE = 128      # vreg lane width
_SUBLANE = 8     # f32 sublane count


def _round_up(n, m):
    return ((n + m - 1) // m) * m


# ----------------------------------------------------------------------------
# Fused kernel: (linear -> relu) x L  ->  masked log_softmax
# ----------------------------------------------------------------------------
def _fused_mlp_kernel(num_layers, num_valid_out, x_ref, *refs):
    *wb_refs, o_ref = refs
    x = x_ref[...].astype(jnp.float32)            # (TB, Din0)

    for l in range(num_layers):
        w = wb_refs[2 * l][...]                   # (Din_l, P_l)  bf16, zero-padded
        b = wb_refs[2 * l + 1][...]               # (1,  P_l)     f32, lane-dense
        # bf16 MXU operands (native on v5e/v6e/v7x), f32 accumulation.
        y = jnp.dot(
            x.astype(jnp.bfloat16), w, preferred_element_type=jnp.float32
        ) + b
        # f32 VPU tail (v5e has no bf16 VPU/EUP); padded lanes stay exactly 0.
        x = jnp.maximum(y, 0.0)

    # Final log_softmax over the REAL columns only: padded lanes -> -inf so
    # they contribute exp(-inf)=0 to the denominator.
    p = x.shape[-1]
    if num_valid_out < p:
        lane = jax.lax.broadcasted_iota(jnp.int32, x.shape, 1)
        x = jnp.where(lane < num_valid_out, x, -jnp.inf)

    m = jnp.max(x, axis=-1, keepdims=True)
    shifted = x - m
    lse = jnp.log(jnp.sum(jnp.exp(shifted), axis=-1, keepdims=True))
    o_ref[...] = (shifted - lse).astype(o_ref.dtype)


# ----------------------------------------------------------------------------
# Wrapper
# ----------------------------------------------------------------------------
def _pad_params(params):
    """Zero-pad every layer's out-dim to 128 lanes; weights pre-cast to bf16."""
    flat = []
    prev_in = params[0][0].shape[0]               # layer-0 in-dim stays native
    dout = dout_p = None
    for (w, b) in params:
        din, dout = w.shape
        dout_p = _round_up(dout, _LANE)
        wp = (
            jnp.zeros((prev_in, dout_p), jnp.float32)
            .at[:din, :dout]
            .set(w.astype(jnp.float32))
            .astype(jnp.bfloat16)                 # bf16 MXU operand (host-side, once)
        )
        bp = jnp.zeros((1, dout_p), jnp.float32).at[0, :dout].set(b)  # f32 tail
        flat.append(wp)
        flat.append(bp)
        prev_in = dout_p
    return flat, dout, dout_p


def net_forward_impl(x, params, *, block_batch=1024, out_dtype=jnp.bfloat16):
    num_layers = len(params)
    flat_wb, dout_real, dout_pad = _pad_params(params)

    B, din0 = x.shape
    # Balanced tile sizing: split B into cdiv(B, block_batch) roughly-equal
    # blocks, each rounded up to a multiple of 8 sublanes, so tail padding is
    # at most one 8-row sublane group per block (no B=260 -> 512-row blowups).
    # When B > block_batch this yields >= 2 grid blocks, which lets the
    # "parallel" grid axis feed both TensorCores on v7x; with a single block
    # (tiny B, as in the demo) the second core is necessarily idle.
    num_blocks = pl.cdiv(B, block_batch)
    tb = _round_up(pl.cdiv(B, num_blocks), _SUBLANE)
    bp = _round_up(B, tb)
    if bp != B:
        x = jnp.pad(x, ((0, bp - B), (0, 0)))     # pad rows; sliced off below
    grid = (bp // tb,)

    in_specs = [pl.BlockSpec((tb, din0), lambda i: (i, 0))]
    for arr in flat_wb:
        # Weights/biases: full array, constant index -> resident across grid.
        in_specs.append(pl.BlockSpec(arr.shape, lambda i: (0, 0)))

    out = pl.pallas_call(
        functools.partial(_fused_mlp_kernel, num_layers, dout_real),
        # Lane-dense (128-wide) bf16 output block: unmasked vst, half the
        # writeback DMA of f32. Padded lanes hold -inf -> must be sliced off.
        out_shape=jax.ShapeDtypeStruct((bp, dout_pad), out_dtype),
        grid=grid,
        in_specs=in_specs,
        out_specs=pl.BlockSpec((tb, dout_pad), lambda i: (i, 0)),
        compiler_params=pltpu.CompilerParams(
            dimension_semantics=("parallel",)
        ),
    )(x, *flat_wb)

    return out[:B, :dout_real]


net_forward = jax.jit(
    net_forward_impl, static_argnames=("block_batch", "out_dtype")
)


# ----------------------------------------------------------------------------
# Parameter init (mimics nn.Linear's U(-1/sqrt(fan_in), 1/sqrt(fan_in)))
# and a pure-JAX f32 reference for a correctness check.
# ----------------------------------------------------------------------------
def init_net_params(key, net_shape):
    params = []
    for i in range(len(net_shape) - 1):
        fan_in, fan_out = net_shape[i], net_shape[i + 1]
        key, kw, kb = jax.random.split(key, 3)
        bound = 1.0 / jnp.sqrt(jnp.float32(fan_in))
        w = jax.random.uniform(kw, (fan_in, fan_out), jnp.float32, -bound, bound)
        b = jax.random.uniform(kb, (fan_out,), jnp.float32, -bound, bound)
        params.append((w, b))
    return params


def net_forward_ref(x, params):
    for w, b in params:
        x = jnp.maximum(x @ w + b, 0.0)
    return jax.nn.log_softmax(x, axis=1)


# TODO(synk): Net.train / Net.test (Adam optimizer, nll_loss, epoch loops) are
# host-side training utilities, not part of the forward pass — not kernelized.

# ----------------------------------------------------------------------------
if __name__ == "__main__":
    # Shapes consistent with the module: input dim = 2 * imbedDim.
    imbed_dim = 32
    net_shape = (2 * imbed_dim, 48, 24, 10)       # netShape for Net.__init__
    batch = 8

    key = jax.random.PRNGKey(0)
    key, kx = jax.random.split(key)
    params = init_net_params(key, net_shape)
    x = jax.random.normal(kx, (batch, net_shape[0]), jnp.float32)

    out = net_forward(x, params)
    out = jax.block_until_ready(out)

    ref = net_forward_ref(x, params)
    assert out.shape == (batch, net_shape[-1])
    # Tolerance deliberately relaxed: bf16 MXU operands + bf16 output storage
    # (precision tradeoff, not a bug).
    assert jnp.allclose(
        out.astype(jnp.float32), ref, atol=5e-2, rtol=5e-2
    ), "mismatch vs reference"

    print("KERNEL_OK")
</pallas_src>

<mosaic_0001>
module attributes {stable_mosaic.version = 11 : i64} {
  func.func @_fused_mlp_kernel(%arg0: i32, %arg1: memref<8x64xf32, #tpu.memory_space<vmem>>, %arg2: memref<64x128xbf16, #tpu.memory_space<vmem>>, %arg3: memref<1x128xf32, #tpu.memory_space<vmem>>, %arg4: memref<128x128xbf16, #tpu.memory_space<vmem>>, %arg5: memref<1x128xf32, #tpu.memory_space<vmem>>, %arg6: memref<128x128xbf16, #tpu.memory_space<vmem>>, %arg7: memref<1x128xf32, #tpu.memory_space<vmem>>, %arg8: memref<8x128xbf16, #tpu.memory_space<vmem>>) attributes {dimension_semantics = [#tpu.dimension_semantics<parallel>], iteration_bounds = array<i64: 1>, scalar_prefetch = 0 : i64, scratch_operands = 0 : i64, tpu.core_type = #tpu.core_type<tc>, window_params = [{transform_indices = @transform_0, window_bounds = array<i64: 8, 64>}, {pipeline_mode = #tpu.pipeline_mode<synchronous>, transform_indices = @transform_1, window_bounds = array<i64: 64, 128>}, {pipeline_mode = #tpu.pipeline_mode<synchronous>, transform_indices = @transform_2, window_bounds = array<i64: 1, 128>}, {pipeline_mode = #tpu.pipeline_mode<synchronous>, transform_indices = @transform_3, window_bounds = array<i64: 128, 128>}, {pipeline_mode = #tpu.pipeline_mode<synchronous>, transform_indices = @transform_4, window_bounds = array<i64: 1, 128>}, {pipeline_mode = #tpu.pipeline_mode<synchronous>, transform_indices = @transform_5, window_bounds = array<i64: 128, 128>}, {pipeline_mode = #tpu.pipeline_mode<synchronous>, transform_indices = @transform_6, window_bounds = array<i64: 1, 128>}, {transform_indices = @transform_7, window_bounds = array<i64: 8, 128>}]} {
    %c0 = arith.constant 0 : index
    %c0_0 = arith.constant 0 : index
    %0 = vector.load %arg1[%c0, %c0_0] : memref<8x64xf32, #tpu.memory_space<vmem>>, vector<8x64xf32>
    %c0_1 = arith.constant 0 : index
    %c0_2 = arith.constant 0 : index
    %1 = vector.load %arg2[%c0_1, %c0_2] : memref<64x128xbf16, #tpu.memory_space<vmem>>, vector<64x128xbf16>
    %c0_3 = arith.constant 0 : index
    %c0_4 = arith.constant 0 : index
    %2 = vector.load %arg3[%c0_3, %c0_4] : memref<1x128xf32, #tpu.memory_space<vmem>>, vector<1x128xf32>
    %3 = arith.truncf %0 : vector<8x64xf32> to vector<8x64xbf16>
    %cst = arith.constant dense<0.000000e+00> : vector<8x128xf32>
    %4 = tpu.matmul %3, %1, %cst {dimension_numbers = #tpu.dot_dimension_numbers<[1], [0], [0], [1], [0, 0, 1, 1], [], []>} : vector<8x64xbf16>, vector<64x128xbf16>, vector<8x128xf32> -> vector<8x128xf32>
    %5 = vector.broadcast %2 : vector<1x128xf32> to vector<8x128xf32>
    %6 = arith.addf %4, %5 : vector<8x128xf32>
    %cst_5 = arith.constant 0.000000e+00 : f32
    %7 = vector.broadcast %cst_5 : f32 to vector<8x128xf32>
    %8 = arith.maximumf %6, %7 : vector<8x128xf32>
    %c0_6 = arith.constant 0 : index
    %c0_7 = arith.constant 0 : index
    %9 = vector.load %arg4[%c0_6, %c0_7] : memref<128x128xbf16, #tpu.memory_space<vmem>>, vector<128x128xbf16>
    %c0_8 = arith.constant 0 : index
    %c0_9 = arith.constant 0 : index
    %10 = vector.load %arg5[%c0_8, %c0_9] : memref<1x128xf32, #tpu.memory_space<vmem>>, vector<1x128xf32>
    %11 = arith.truncf %8 : vector<8x128xf32> to vector<8x128xbf16>
    %cst_10 = arith.constant dense<0.000000e+00> : vector<8x128xf32>
    %12 = tpu.matmul %11, %9, %cst_10 {dimension_numbers = #tpu.dot_dimension_numbers<[1], [0], [0], [1], [0, 0, 1, 1], [], []>} : vector<8x128xbf16>, vector<128x128xbf16>, vector<8x128xf32> -> vector<8x128xf32>
    %13 = vector.broadcast %10 : vector<1x128xf32> to vector<8x128xf32>
    %14 = arith.addf %12, %13 : vector<8x128xf32>
    %cst_11 = arith.constant 0.000000e+00 : f32
    %15 = vector.broadcast %cst_11 : f32 to vector<8x128xf32>
    %16 = arith.maximumf %14, %15 : vector<8x128xf32>
    %c0_12 = arith.constant 0 : index
    %c0_13 = arith.constant 0 : index
    %17 = vector.load %arg6[%c0_12, %c0_13] : memref<128x128xbf16, #tpu.memory_space<vmem>>, vector<128x128xbf16>
    %c0_14 = arith.constant 0 : index
    %c0_15 = arith.constant 0 : index
    %18 = vector.load %arg7[%c0_14, %c0_15] : memref<1x128xf32, #tpu.memory_space<vmem>>, vector<1x128xf32>
    %19 = arith.truncf %16 : vector<8x128xf32> to vector<8x128xbf16>
    %cst_16 = arith.constant dense<0.000000e+00> : vector<8x128xf32>
    %20 = tpu.matmul %19, %17, %cst_16 {dimension_numbers = #tpu.dot_dimension_numbers<[1], [0], [0], [1], [0, 0, 1, 1], [], []>} : vector<8x128xbf16>, vector<128x128xbf16>, vector<8x128xf32> -> vector<8x128xf32>
    %21 = vector.broadcast %18 : vector<1x128xf32> to vector<8x128xf32>
    %22 = arith.addf %20, %21 : vector<8x128xf32>
    %cst_17 = arith.constant 0.000000e+00 : f32
    %23 = vector.broadcast %cst_17 : f32 to vector<8x128xf32>
    %24 = arith.maximumf %22, %23 : vector<8x128xf32>
    %25 = tpu.iota {dimensions = array<i32: 1>} : vector<8x128xi32>
    %c10_i32 = arith.constant 10 : i32
    %26 = vector.broadcast %c10_i32 : i32 to vector<8x128xi32>
    %27 = arith.cmpi slt, %25, %26 : vector<8x128xi32>
    %cst_18 = arith.constant 0xFF800000 : f32
    %28 = vector.broadcast %cst_18 : f32 to vector<8x128xf32>
    %29 = arith.select %27, %24, %28 : vector<8x128xi1>, vector<8x128xf32>
    %cst_19 = arith.constant dense<0xFF800000> : vector<8xf32>
    %30 = vector.multi_reduction <maximumf>, %29, %cst_19 [1] : vector<8x128xf32> to vector<8xf32>
    %31 = vector.shape_cast %30 : vector<8xf32> to vector<8x1xf32>
    %32 = vector.broadcast %31 : vector<8x1xf32> to vector<8x128xf32>
    %33 = arith.subf %29, %32 : vector<8x128xf32>
    %34 = math.exp %33 : vector<8x128xf32>
    %cst_20 = arith.constant dense<0.000000e+00> : vector<8xf32>
    %35 = vector.multi_reduction <add>, %34, %cst_20 [1] : vector<8x128xf32> to vector<8xf32>
    %36 = vector.shape_cast %35 : vector<8xf32> to vector<8x1xf32>
    %37 = math.log %36 : vector<8x1xf32>
    %38 = vector.broadcast %37 : vector<8x1xf32> to vector<8x128xf32>
    %39 = arith.subf %33, %38 : vector<8x128xf32>
    %40 = arith.truncf %39 : vector<8x128xf32> to vector<8x128xbf16>
    %c0_21 = arith.constant 0 : index
    %c0_22 = arith.constant 0 : index
    %41 = vector.load %arg8[%c0_21, %c0_22] : memref<8x128xbf16, #tpu.memory_space<vmem>>, vector<8x128xbf16>
    tpu.vector_store %arg8[%c0_21, %c0_22], %40 {strides = array<i32>} : memref<8x128xbf16, #tpu.memory_space<vmem>>, vector<8x128xbf16>,
    return
  }
  func.func @transform_0(%arg0: i32) -> (i32, i32) {
    %c0_i32 = arith.constant 0 : i32
    %c0_i32_0 = arith.constant 0 : i32
    return %arg0, %c0_i32 : i32, i32
  }
  func.func @transform_1(%arg0: i32) -> (i32, i32) {
    %c0_i32 = arith.constant 0 : i32
    %c0_i32_0 = arith.constant 0 : i32
    %c0_i32_1 = arith.constant 0 : i32
    return %c0_i32, %c0_i32_0 : i32, i32
  }
  func.func @transform_2(%arg0: i32) -> (i32, i32) {
    %c0_i32 = arith.constant 0 : i32
    %c0_i32_0 = arith.constant 0 : i32
    %c0_i32_1 = arith.constant 0 : i32
    return %c0_i32, %c0_i32_0 : i32, i32
  }
  func.func @transform_3(%arg0: i32) -> (i32, i32) {
    %c0_i32 = arith.constant 0 : i32
    %c0_i32_0 = arith.constant 0 : i32
    %c0_i32_1 = arith.constant 0 : i32
    return %c0_i32, %c0_i32_0 : i32, i32
  }
  func.func @transform_4(%arg0: i32) -> (i32, i32) {
    %c0_i32 = arith.constant 0 : i32
    %c0_i32_0 = arith.constant 0 : i32
    %c0_i32_1 = arith.constant 0 : i32
    return %c0_i32, %c0_i32_0 : i32, i32
  }
  func.func @transform_5(%arg0: i32) -> (i32, i32) {
    %c0_i32 = arith.constant 0 : i32
    %c0_i32_0 = arith.constant 0 : i32
    %c0_i32_1 = arith.constant 0 : i32
    return %c0_i32, %c0_i32_0 : i32, i32
  }
  func.func @transform_6(%arg0: i32) -> (i32, i32) {
    %c0_i32 = arith.constant 0 : i32
    %c0_i32_0 = arith.constant 0 : i32
    %c0_i32_1 = arith.constant 0 : i32
    return %c0_i32, %c0_i32_0 : i32, i32
  }
  func.func @transform_7(%arg0: i32) -> (i32, i32) {
    %c0_i32 = arith.constant 0 : i32
    %c0_i32_0 = arith.constant 0 : i32
    return %arg0, %c0_i32 : i32, i32
  }
}

</mosaic_0001>

<llo_original>
// kernel: net_forward_impl.1
$region0: #{net_forward_impl.1}
  #allocation0 [shape = 'u32[]', space=smem, size = 0x4, offset = 0x4, fixed_abs, tag = 'smem constant byte address 0x4 - core index']
  #allocation1 [shape = 'u32[144,128]{1,0:T(1,128)}', space=vmem, size = 0x12000, scoped, tag = 'internal scratch']
  %s0 = inlined_call_operand.vmem [shape: f32[8,64], index: 0, kind: input, shape index: {}]
  %s1 = inlined_call_operand.vmem [shape: bf16[64,128], index: 1, kind: input, shape index: {}]
  %s2 = inlined_call_operand.vmem [shape: f32[1,128], index: 2, kind: input, shape index: {}]
  %s3 = inlined_call_operand.vmem [shape: bf16[128,128], index: 3, kind: input, shape index: {}]
  %s4 = inlined_call_operand.vmem [shape: f32[1,128], index: 4, kind: input, shape index: {}]
  %s5 = inlined_call_operand.vmem [shape: bf16[128,128], index: 5, kind: input, shape index: {}]
  %s6 = inlined_call_operand.vmem [shape: f32[1,128], index: 6, kind: input, shape index: {}]
  %s7 = inlined_call_operand.hbm [shape: bf16[8,128], index: 7, kind: output, shape index: {}]
  %s8 = sld [smem:[#allocation0]]
  $region38: #{net_forward_impl.1} parent=0
    _
  %s10 = ssub.s32 1, %s8
  %s11 = scalar_select 0, %s10, %s8
  $region1: #{net_forward_impl.1} parent=0
    #allocation2 [shape = 'u8[2048]{0}', space=vmem, size = 0x800, scoped, tag = 'output window, operand 0, single buffered']
    #allocation3 [shape = 's32[1]{0}', space=sflag, size = 0x4, scoped, tag = 'scoped memory for net_forward_impl.1']
    %12 = vsyncpa [#allocation3], 0
    // Predicated region
    $region2: #{net_forward_impl.1} parent=1 // pred_check
      _
    $region3: #{net_forward_impl.1} parent=1 // pred_check_branch
      %14 = sbr.rel (0) target = $region5
    $region4: #{net_forward_impl.1} parent=1 // pred_region
      _
    $region5: #{net_forward_impl.1} parent=1 // pred_fallthru
      _
    // Predicated region
    $region6: #{net_forward_impl.1} parent=1 // pred_check
      _
    $region7: #{net_forward_impl.1} parent=1 // pred_check_branch
      %16 = sbr.rel (0) target = $region9
    $region8: #{net_forward_impl.1} parent=1 // pred_region
      _
    $region9: #{net_forward_impl.1} parent=1 // pred_fallthru
      _
    // Predicated region
    $region10: #{net_forward_impl.1} parent=1 // pred_check
      _
    $region11: #{net_forward_impl.1} parent=1 // pred_check_branch
      %18 = sbr.rel (0) target = $region13
    $region12: #{net_forward_impl.1} parent=1 // pred_region
      _
    $region13: #{net_forward_impl.1} parent=1 // pred_fallthru
      _
    // Predicated region
    $region14: #{net_forward_impl.1} parent=1 // pred_check
      _
    $region15: #{net_forward_impl.1} parent=1 // pred_check_branch
      %20 = sbr.rel (0) target = $region17
    $region16: #{net_forward_impl.1} parent=1 // pred_region
      _
    $region17: #{net_forward_impl.1} parent=1 // pred_fallthru
      _
    // Predicated region
    $region18: #{net_forward_impl.1} parent=1 // pred_check
      _
    $region19: #{net_forward_impl.1} parent=1 // pred_check_branch
      %22 = sbr.rel (0) target = $region21
    $region20: #{net_forward_impl.1} parent=1 // pred_region
      _
    $region21: #{net_forward_impl.1} parent=1 // pred_fallthru
      _
    // Predicated region
    $region22: #{net_forward_impl.1} parent=1 // pred_check
      _
    $region23: #{net_forward_impl.1} parent=1 // pred_check_branch
      %24 = sbr.rel (0) target = $region25
    $region24: #{net_forward_impl.1} parent=1 // pred_region
      _
    $region25: #{net_forward_impl.1} parent=1 // pred_fallthru
      _
    // Predicated region
    $region26: #{net_forward_impl.1} parent=1 // pred_check
      _
    $region27: #{net_forward_impl.1} parent=1 // pred_check_branch
      %26 = sbr.rel (0) target = $region29
    $region28: #{net_forward_impl.1} parent=1 // pred_region
      _
    $region29: #{net_forward_impl.1} parent=1 // pred_fallthru
      _
    %v28 = vld [vmem:[%s0] sm:$0xff]
    %v29 = vld [vmem:[%s1] sm:$0xf]
    %v30 = vld [vmem:[%s1 + $0x4] sm:$0xf]
    %v31 = vld [vmem:[%s1 + $0x8] sm:$0xf]
    %v32 = vld [vmem:[%s1 + $0xc] sm:$0xf]
    %v33 = vld [vmem:[%s1 + $0x10] sm:$0xf]
    %v34 = vld [vmem:[%s1 + $0x14] sm:$0xf]
    %v35 = vld [vmem:[%s1 + $0x18] sm:$0xf]
    %v36 = vld [vmem:[%s1 + $0x1c] sm:$0xf]
    %v37 = vld [vmem:[%s2] sm:$0x1]
    %v38 = vpack.c.bf16 %v28, %v28
    %v40 = vlaneseq
    %v41 = vshrl.u32 %v40, 7
    %v42 = vsub.s32 0, %v41
    %v43 = vrot.slane %v37, %v42
    %v53 = vunpack.c.l.b16 %v29
    %v54 = vunpack.c.l.b16 %v30
    %v55 = vunpack.c.l.b16 %v31
    %v56 = vunpack.c.l.b16 %v32
    %v57 = vunpack.c.l.b16 %v33
    %v58 = vunpack.c.l.b16 %v34
    %v59 = vunpack.c.l.b16 %v35
    %v60 = vunpack.c.l.b16 %v36
    %v61 = vpack.c.b16 %v54, %v53
    %v62 = vpack.c.b16 %v56, %v55
    %v63 = vpack.c.b16 %v58, %v57
    %v64 = vpack.c.b16 %v60, %v59
    %vm69 = vcmask 523264
    %v71 = vsel %vm69, %v38, 0
    %73 = vmatprep.subr.bf16.mxu0 0
    %74 = vmatpush1.bf16.msra.mxu0 %v61
    %75 = vmatprep.subr.bf16.mxu0 0
    %76 = vmatpush1.bf16.msra.mxu0 %v62
    %77 = vmatprep.subr.bf16.mxu0 0
    %78 = vmatpush1.bf16.msra.mxu0 %v63
    %79 = vmatprep.subr.bf16.mxu0 0
    %80 = vmatpush1.bf16.msra.mxu0 %v64
    %81 = vmatprep.subr.bf16.mxu0 0
    %82 = vmatpush1.bf16.msra.mxu0 0
    %83 = vmatprep.subr.bf16.mxu0 0
    %84 = vmatpush1.bf16.msra.mxu0 0
    %85 = vmatprep.subr.bf16.mxu0 0
    %86 = vmatpush1.bf16.msra.mxu0 0
    %87 = vmatprep.subr.bf16.mxu0 0
    %88 = vmatpush1.bf16.msra.mxu0 0
    %89 = vmatprep.subr.bf16.mxu0 0
    %90 = vmatpush1.bf16.msra.mxu0 0
    %91 = vmatprep.subr.bf16.mxu0 0
    %92 = vmatpush1.bf16.msra.mxu0 0
    %93 = vmatprep.subr.bf16.mxu0 0
    %94 = vmatpush1.bf16.msra.mxu0 0
    %95 = vmatprep.subr.bf16.mxu0 0
    %96 = vmatpush1.bf16.msra.mxu0 0
    %97 = vmatprep.subr.bf16.mxu0 0
    %98 = vmatpush1.bf16.msra.mxu0 0
    %99 = vmatprep.subr.bf16.mxu0 0
    %100 = vmatpush1.bf16.msra.mxu0 0
    %101 = vmatprep.subr.bf16.mxu0 0
    %102 = vmatpush1.bf16.msra.mxu0 0
    %103 = vmatprep.subr.bf16.mxu0 0
    %104 = vmatpush1.bf16.msra.mxu0 0
    %105 = vmatprep.mubr.bf16.mxu0 0
    %106 = vmatmul.mubr.bf16.gmra.mrb[0].mxu0 %v71
    %v107 = vpop.f32.mrb[0].mxu0
    %v108 = vadd.f32 %v43, %v107
    %v109 = vpop.f32.mrb[0].mxu0
    %v110 = vpop.f32.mrb[0].mxu0
    %v111 = vpop.f32.mrb[0].mxu0
    %112 = vdwg.mxu0
    %v113 = vmax.f32 %v108, 0.0
    %v114 = vld [vmem:[%s3] sm:$0xf]
    %v115 = vld [vmem:[%s3 + $0x4] sm:$0xf]
    %v116 = vld [vmem:[%s3 + $0x8] sm:$0xf]
    %v117 = vld [vmem:[%s3 + $0xc] sm:$0xf]
    %v118 = vld [vmem:[%s3 + $0x10] sm:$0xf]
    %v119 = vld [vmem:[%s3 + $0x14] sm:$0xf]
    %v120 = vld [vmem:[%s3 + $0x18] sm:$0xf]
    %v121 = vld [vmem:[%s3 + $0x1c] sm:$0xf]
    %v122 = vld [vmem:[%s3 + $0x20] sm:$0xf]
    %v123 = vld [vmem:[%s3 + $0x24] sm:$0xf]
    %v124 = vld [vmem:[%s3 + $0x28] sm:$0xf]
    %v125 = vld [vmem:[%s3 + $0x2c] sm:$0xf]
    %v126 = vld [vmem:[%s3 + $0x30] sm:$0xf]
    %v127 = vld [vmem:[%s3 + $0x34] sm:$0xf]
    %v128 = vld [vmem:[%s3 + $0x38] sm:$0xf]
    %v129 = vld [vmem:[%s3 + $0x3c] sm:$0xf]
    %v130 = vld [vmem:[%s4] sm:$0x1]
    %v131 = vpack.c.bf16 %v113, %v113
    %v133 = vlaneseq
    %v134 = vshrl.u32 %v133, 7
    %v135 = vsub.s32 0, %v134
    %v136 = vrot.slane %v130, %v135
    %v154 = vunpack.c.l.b16 %v114
    %v155 = vunpack.c.l.b16 %v115
    %v156 = vunpack.c.l.b16 %v116
    %v157 = vunpack.c.l.b16 %v117
    %v158 = vunpack.c.l.b16 %v118
    %v159 = vunpack.c.l.b16 %v119
    %v160 = vunpack.c.l.b16 %v120
    %v161 = vunpack.c.l.b16 %v121
    %v162 = vunpack.c.l.b16 %v122
    %v163 = vunpack.c.l.b16 %v123
    %v164 = vunpack.c.l.b16 %v124
    %v165 = vunpack.c.l.b16 %v125
    %v166 = vunpack.c.l.b16 %v126
    %v167 = vunpack.c.l.b16 %v127
    %v168 = vunpack.c.l.b16 %v128
    %v169 = vunpack.c.l.b16 %v129
    %v170 = vpack.c.b16 %v155, %v154
    %v171 = vpack.c.b16 %v157, %v156
    %v172 = vpack.c.b16 %v159, %v158
    %v173 = vpack.c.b16 %v161, %v160
    %v174 = vpack.c.b16 %v163, %v162
    %v175 = vpack.c.b16 %v165, %v164
    %v176 = vpack.c.b16 %v167, %v166
    %v177 = vpack.c.b16 %v169, %v168
    %186 = vmatprep.subr.bf16.mxu0 0
    %187 = vmatpush1.bf16.msra.mxu0 %v170
    %188 = vmatprep.subr.bf16.mxu0 0
    %189 = vmatpush1.bf16.msra.mxu0 %v171
    %190 = vmatprep.subr.bf16.mxu0 0
    %191 = vmatpush1.bf16.msra.mxu0 %v172
    %192 = vmatprep.subr.bf16.mxu0 0
    %193 = vmatpush1.bf16.msra.mxu0 %v173
    %194 = vmatprep.subr.bf16.mxu0 0
    %195 = vmatpush1.bf16.msra.mxu0 %v174
    %196 = vmatprep.subr.bf16.mxu0 0
    %197 = vmatpush1.bf16.msra.mxu0 %v175
    %198 = vmatprep.subr.bf16.mxu0 0
    %199 = vmatpush1.bf16.msra.mxu0 %v176
    %200 = vmatprep.subr.bf16.mxu0 0
    %201 = vmatpush1.bf16.msra.mxu0 %v177
    %202 = vmatprep.subr.bf16.mxu0 0
    %203 = vmatpush1.bf16.msra.mxu0 0
    %204 = vmatprep.subr.bf16.mxu0 0
    %205 = vmatpush1.bf16.msra.mxu0 0
    %206 = vmatprep.subr.bf16.mxu0 0
    %207 = vmatpush1.bf16.msra.mxu0 0
    %208 = vmatprep.subr.bf16.mxu0 0
    %209 = vmatpush1.bf16.msra.mxu0 0
    %210 = vmatprep.subr.bf16.mxu0 0
    %211 = vmatpush1.bf16.msra.mxu0 0
    %212 = vmatprep.subr.bf16.mxu0 0
    %213 = vmatpush1.bf16.msra.mxu0 0
    %214 = vmatprep.subr.bf16.mxu0 0
    %215 = vmatpush1.bf16.msra.mxu0 0
    %216 = vmatprep.subr.bf16.mxu0 0
    %217 = vmatpush1.bf16.msra.mxu0 0
    %218 = vmatprep.mubr.bf16.mxu0 0
    %219 = vmatmul.mubr.bf16.gmra.mrb[0].mxu0 %v131
    %v220 = vpop.f32.mrb[0].mxu0
    %v221 = vadd.f32 %v136, %v220
    %v222 = vpop.f32.mrb[0].mxu0
    %v223 = vpop.f32.mrb[0].mxu0
    %v224 = vpop.f32.mrb[0].mxu0
    %225 = vdwg.mxu0
    %v226 = vmax.f32 %v221, 0.0
    %v227 = vld [vmem:[%s5] sm:$0xf]
    %v228 = vld [vmem:[%s5 + $0x4] sm:$0xf]
    %v229 = vld [vmem:[%s5 + $0x8] sm:$0xf]
    %v230 = vld [vmem:[%s5 + $0xc] sm:$0xf]
    %v231 = vld [vmem:[%s5 + $0x10] sm:$0xf]
    %v232 = vld [vmem:[%s5 + $0x14] sm:$0xf]
    %v233 = vld [vmem:[%s5 + $0x18] sm:$0xf]
    %v234 = vld [vmem:[%s5 + $0x1c] sm:$0xf]
    %v235 = vld [vmem:[%s5 + $0x20] sm:$0xf]
    %v236 = vld [vmem:[%s5 + $0x24] sm:$0xf]
    %v237 = vld [vmem:[%s5 + $0x28] sm:$0xf]
    %v238 = vld [vmem:[%s5 + $0x2c] sm:$0xf]
    %v239 = vld [vmem:[%s5 + $0x30] sm:$0xf]
    %v240 = vld [vmem:[%s5 + $0x34] sm:$0xf]
    %v241 = vld [vmem:[%s5 + $0x38] sm:$0xf]
    %v242 = vld [vmem:[%s5 + $0x3c] sm:$0xf]
    %v243 = vld [vmem:[%s6] sm:$0x1]
    %v244 = vpack.c.bf16 %v226, %v226
    %v246 = vlaneseq
    %v247 = vshrl.u32 %v246, 7
    %v248 = vsub.s32 0, %v247
    %v249 = vrot.slane %v243, %v248
    %v267 = vunpack.c.l.b16 %v227
    %v268 = vunpack.c.l.b16 %v228
    %v269 = vunpack.c.l.b16 %v229
    %v270 = vunpack.c.l.b16 %v230
    %v271 = vunpack.c.l.b16 %v231
    %v272 = vunpack.c.l.b16 %v232
    %v273 = vunpack.c.l.b16 %v233
    %v274 = vunpack.c.l.b16 %v234
    %v275 = vunpack.c.l.b16 %v235
    %v276 = vunpack.c.l.b16 %v236
    %v277 = vunpack.c.l.b16 %v237
    %v278 = vunpack.c.l.b16 %v238
    %v279 = vunpack.c.l.b16 %v239
    %v280 = vunpack.c.l.b16 %v240
    %v281 = vunpack.c.l.b16 %v241
    %v282 = vunpack.c.l.b16 %v242
    %v283 = vpack.c.b16 %v268, %v267
    %v284 = vpack.c.b16 %v270, %v269
    %v285 = vpack.c.b16 %v272, %v271
    %v286 = vpack.c.b16 %v274, %v273
    %v287 = vpack.c.b16 %v276, %v275
    %v288 = vpack.c.b16 %v278, %v277
    %v289 = vpack.c.b16 %v280, %v279
    %v290 = vpack.c.b16 %v282, %v281
    %299 = vmatprep.subr.bf16.mxu0 0
    %300 = vmatpush1.bf16.msra.mxu0 %v283
    %301 = vmatprep.subr.bf16.mxu0 0
    %302 = vmatpush1.bf16.msra.mxu0 %v284
    %303 = vmatprep.subr.bf16.mxu0 0
    %304 = vmatpush1.bf16.msra.mxu0 %v285
    %305 = vmatprep.subr.bf16.mxu0 0
    %306 = vmatpush1.bf16.msra.mxu0 %v286
    %307 = vmatprep.subr.bf16.mxu0 0
    %308 = vmatpush1.bf16.msra.mxu0 %v287
    %309 = vmatprep.subr.bf16.mxu0 0
    %310 = vmatpush1.bf16.msra.mxu0 %v288
    %311 = vmatprep.subr.bf16.mxu0 0
    %312 = vmatpush1.bf16.msra.mxu0 %v289
    %313 = vmatprep.subr.bf16.mxu0 0
    %314 = vmatpush1.bf16.msra.mxu0 %v290
    %315 = vmatprep.subr.bf16.mxu0 0
    %316 = vmatpush1.bf16.msra.mxu0 0
    %317 = vmatprep.subr.bf16.mxu0 0
    %318 = vmatpush1.bf16.msra.mxu0 0
    %319 = vmatprep.subr.bf16.mxu0 0
    %320 = vmatpush1.bf16.msra.mxu0 0
    %321 = vmatprep.subr.bf16.mxu0 0
    %322 = vmatpush1.bf16.msra.mxu0 0
    %323 = vmatprep.subr.bf16.mxu0 0
    %324 = vmatpush1.bf16.msra.mxu0 0
    %325 = vmatprep.subr.bf16.mxu0 0
    %326 = vmatpush1.bf16.msra.mxu0 0
    %327 = vmatprep.subr.bf16.mxu0 0
    %328 = vmatpush1.bf16.msra.mxu0 0
    %329 = vmatprep.subr.bf16.mxu0 0
    %330 = vmatpush1.bf16.msra.mxu0 0
    %331 = vmatprep.mubr.bf16.mxu0 0
    %332 = vmatmul.mubr.bf16.gmra.mrb[0].mxu0 %v244
    %v333 = vpop.f32.mrb[0].mxu0
    %v334 = vadd.f32 %v249, %v333
    %v335 = vpop.f32.mrb[0].mxu0
    %v336 = vpop.f32.mrb[0].mxu0
    %v337 = vpop.f32.mrb[0].mxu0
    %338 = vdwg.mxu0
    %v339 = vmax.f32 %v334, 0.0
    %v340 = vlaneseq
    %v341 = vand.u32 %v340, 127
    %vm342 = vcmp.lt.s32.totalorder %v341, 10
    %v343 = vsel %vm342, %v339, -inf
    %344 = vmax.xlane.f32.xlu0 %v343
    %v345 = vpop.xlane.xlu0 %344
    %v346 = vsub.f32 %v343, %v345
    %v347 = vmul.f32 %v346, 1.442695
    %v348 = vpow.pop %v347
    %349 = vadd.xlane.f32.xlu0 %v348
    %v350 = vpop.xlane.xlu0 %349
    %v351 = vlog2.pop %v350
    %v352 = vmul.f32 %v351, 0.6931472
    %v353 = vsub.f32 %v346, %v352
    %v354 = vpack.c.bf16 %v353, %v353
    %355 = vst [vmem:[#allocation2] sm:$0xf] %v354
    // Predicated region
    $region30: #{net_forward_impl.1} parent=1 // pred_check
      _
    $region31: #{net_forward_impl.1} parent=1 // pred_check_branch
      %357 = sbr.rel (0) target = $region33
    $region32: #{net_forward_impl.1} parent=1 // pred_region
      %s359 = ssub.s32 64, 64
      %360 = vsyncadd [#allocation3], %s359
      %s362 = sshll.u32 [#allocation2], 4
      %s363 = int_to_ptr.vmem [resolvable:$true] %s362
      %365 = dma.vmem_to_hbm [thread:$0]  %s363, 64, %s7, [#allocation3]
    $region33: #{net_forward_impl.1} parent=1 // pred_fallthru
      _
    // Predicated region
    $region34: #{net_forward_impl.1} parent=1 // pred_check
      _
    $region35: #{net_forward_impl.1} parent=1 // pred_check_branch
      %367 = sbr.rel (0) target = $region37
    $region36: #{net_forward_impl.1} parent=1 // pred_region
      %368 = dma.done [#allocation3], 64
    $region37: #{net_forward_impl.1} parent=1 // pred_fallthru
      _
    %369 = vsyncpa [#allocation3], 1

</llo_original>
